<compile_context>
chip_gen: v7x
topology: tpu7x:2x2x1
jax: 0.10.0
libtpu: 0.0.40
codegen_flags: <defaults>
</compile_context>

<pallas_src>
import jax
import jax.numpy as jnp
from jax.experimental import pallas as pl
from jax.experimental.pallas import tpu as pltpu


def _residual_mlp_kernel(x_ref, w1_ref, b1_ref, w2_ref, b2_ref, scale_ref, o_ref):
    # x_ref / o_ref: (TM, C); w1: (C, H); w2: (H, C); b1: (1, H); b2: (1, C);
    # scale_ref: (TM, 1) per-row drop-path keep/scale (== 1.0 in eval mode).
    x = x_ref[...]                                            # (TM, C), input dtype

    # m(x): Linear -> Hardswish -> Linear (MXU in weight dtype, f32 accumulation)
    h = jnp.dot(x.astype(w1_ref.dtype), w1_ref[...],
                preferred_element_type=jnp.float32) + b1_ref[...]
    h = h * jnp.clip(h + 3.0, 0.0, 6.0) * (1.0 / 6.0)          # Hardswish (f32, VPU)
    y = jnp.dot(h.astype(w2_ref.dtype), w2_ref[...],
                preferred_element_type=jnp.float32) + b2_ref[...]

    # residual add with per-row drop-path scale, all in f32, full-tile store.
    o_ref[...] = (x.astype(jnp.float32) + y * scale_ref[...]).astype(o_ref.dtype)


def _choose_tm(M, C, H, x_bytes, w_bytes, vmem_budget=48 * 1024 * 1024, tm_max=512):
    """Largest TM (<= tm_max, multiple of 8) whose working set fits the VMEM budget.

    Budget = 2x double-buffered (TM, C) input + (TM, C) output + (TM, 1) scale
    tiles, plus the resident (double-buffered) weights/biases, plus the f32
    intermediates (TM, H) and (TM, C) the kernel materializes.
    """
    weight_bytes = 2 * ((C * H + H * C) * w_bytes + (C + H) * 4)
    m_rounded = max(8, -(-M // 8) * 8)
    tm = -(-min(tm_max, m_rounded) // 8) * 8
    while tm > 8:
        tile_bytes = 2 * (2 * tm * C * x_bytes + tm * 4) + tm * (H + C) * 4
        if tile_bytes + weight_bytes <= vmem_budget:
            break
        tm = max(8, ((tm // 2) + 7) // 8 * 8)
    return tm


def residual_mlp(x, w1, b1, w2, b2, *, drop=0.0, training=False, rng=None,
                 matmul_dtype=jnp.bfloat16, tm=None):
    """out = x + m(x) [* per-sample drop-path scale], m = MLP(C->H->C) w/ Hardswish."""
    B, N, C = x.shape
    H = w1.shape[1]
    M = B * N

    # Per-sample drop-path keep/scale (torch.rand(B,1,1).ge_(drop).div(1-drop)).
    # TODO(synk): mask is drawn host-side with jax.random (matching torch.rand
    # semantics); only its application is fused into the kernel.
    if training and drop > 0.0:
        assert rng is not None
        keep = (jax.random.uniform(rng, (B, 1)) >= drop).astype(jnp.float32)
        scale = keep / (1.0 - drop)
    else:
        scale = jnp.ones((B, 1), jnp.float32)
    # Row order after flattening is (b*N + n), so repeat each sample's scale N times.
    scale_rows = jnp.repeat(scale, N, axis=0)                  # (M, 1)

    x_flat = x.reshape(M, C)

    x_bytes = x.dtype.itemsize
    w_bytes = jnp.dtype(matmul_dtype).itemsize
    if tm is None:
        tm = _choose_tm(M, C, H, x_bytes, w_bytes)

    num_tiles = pl.cdiv(M, tm)
    if num_tiles > 1 and num_tiles % 2 == 1:
        num_tiles += 1            # keep the parallel grid balanced on v7x's 2 TCs
    M_pad = num_tiles * tm
    if M_pad != M:
        x_flat = jnp.pad(x_flat, ((0, M_pad - M), (0, 0)))
        scale_rows = jnp.pad(scale_rows, ((0, M_pad - M), (0, 0)))

    w1m = w1.astype(matmul_dtype)
    w2m = w2.astype(matmul_dtype)
    b1_2d = b1.reshape(1, H).astype(jnp.float32)
    b2_2d = b2.reshape(1, C).astype(jnp.float32)

    cost = pl.CostEstimate(
        flops=4 * M_pad * C * H,
        transcendentals=0,
        bytes_accessed=(2 * M_pad * C * x_bytes + M_pad * 4
                        + 2 * C * H * w_bytes + (C + H) * 4))

    out_flat = pl.pallas_call(
        _residual_mlp_kernel,
        out_shape=jax.ShapeDtypeStruct((M_pad, C), x.dtype),
        grid_spec=pltpu.PrefetchScalarGridSpec(
            num_scalar_prefetch=0,
            grid=(num_tiles,),
            in_specs=[
                pl.BlockSpec((tm, C), lambda i: (i, 0)),       # x rows (lane-dense C)
                pl.BlockSpec((C, H), lambda i: (0, 0)),        # w1 (resident)
                pl.BlockSpec((1, H), lambda i: (0, 0)),        # b1
                pl.BlockSpec((H, C), lambda i: (0, 0)),        # w2 (resident)
                pl.BlockSpec((1, C), lambda i: (0, 0)),        # b2
                pl.BlockSpec((tm, 1), lambda i: (i, 0)),       # per-row drop-path scale
            ],
            out_specs=pl.BlockSpec((tm, C), lambda i: (i, 0)),
        ),
        compiler_params=pltpu.CompilerParams(
            dimension_semantics=("parallel",),
            vmem_limit_bytes=64 * 1024 * 1024),
        cost_estimate=cost,
    )(x_flat, w1m, b1_2d, w2m, b2_2d, scale_rows)

    return out_flat[:M].reshape(B, N, C)


def _reference(x, w1, b1, w2, b2, matmul_dtype=None):
    """Pure-JAX reference (eval mode) with the same matmul-dtype casts."""
    if matmul_dtype is not None:
        xm, w1m, w2m = x.astype(matmul_dtype), w1.astype(matmul_dtype), w2.astype(matmul_dtype)
    else:
        xm, w1m, w2m = x, w1, w2
    h = jnp.dot(xm, w1m, preferred_element_type=jnp.float32) + b1
    h = h * jnp.clip(h + 3.0, 0.0, 6.0) / 6.0
    y = jnp.dot(h.astype(w2m.dtype), w2m, preferred_element_type=jnp.float32) + b2
    return x + y


if __name__ == "__main__":
    # Small but lane-dense shapes (C multiple of 128, H = 2C) for a LeViT-like stage.
    B, N, C, H = 2, 16, 128, 256
    key = jax.random.PRNGKey(0)
    kx, k1, k2, k3, k4 = jax.random.split(key, 5)

    x = jax.random.normal(kx, (B, N, C), dtype=jnp.float32)
    w1 = jax.random.normal(k1, (C, H), dtype=jnp.float32) * 0.05
    b1 = jax.random.normal(k2, (H,), dtype=jnp.float32) * 0.05
    w2 = jax.random.normal(k3, (H, C), dtype=jnp.float32) * 0.05
    b2 = jax.random.normal(k4, (C,), dtype=jnp.float32) * 0.05

    # eval path, bf16 MXU matmuls (default) vs matching-cast reference
    out = jax.block_until_ready(residual_mlp(x, w1, b1, w2, b2))
    ref = _reference(x, w1, b1, w2, b2, matmul_dtype=jnp.bfloat16)
    assert out.shape == (B, N, C)
    assert jnp.allclose(out, ref, atol=1e-2, rtol=1e-2), float(jnp.max(jnp.abs(out - ref)))

    # full-f32 path vs f32 reference (tight tolerance)
    out_f32 = jax.block_until_ready(
        residual_mlp(x, w1, b1, w2, b2, matmul_dtype=jnp.float32))
    ref_f32 = _reference(x, w1, b1, w2, b2)
    assert jnp.allclose(out_f32, ref_f32, atol=1e-4, rtol=1e-4)

    # training path (per-sample drop-path, fused scale application)
    out_t = jax.block_until_ready(
        residual_mlp(x, w1, b1, w2, b2, drop=0.1, training=True,
                     rng=jax.random.PRNGKey(1)))
    assert out_t.shape == (B, N, C)

    print("KERNEL_OK")
</pallas_src>

<mosaic_0001>
module attributes {stable_mosaic.version = 11 : i64} {
  func.func @_residual_mlp_kernel(%arg0: i32, %arg1: memref<32x128xf32, #tpu.memory_space<vmem>>, %arg2: memref<128x256xbf16, #tpu.memory_space<vmem>>, %arg3: memref<1x256xf32, #tpu.memory_space<vmem>>, %arg4: memref<256x128xbf16, #tpu.memory_space<vmem>>, %arg5: memref<1x128xf32, #tpu.memory_space<vmem>>, %arg6: memref<32x1xf32, #tpu.memory_space<vmem>>, %arg7: memref<32x128xf32, #tpu.memory_space<vmem>>) attributes {dimension_semantics = [#tpu.dimension_semantics<parallel>], iteration_bounds = array<i64: 1>, scalar_prefetch = 0 : i64, scratch_operands = 0 : i64, tpu.core_type = #tpu.core_type<tc>, window_params = [{transform_indices = @transform_0, window_bounds = array<i64: 32, 128>}, {pipeline_mode = #tpu.pipeline_mode<synchronous>, transform_indices = @transform_1, window_bounds = array<i64: 128, 256>}, {pipeline_mode = #tpu.pipeline_mode<synchronous>, transform_indices = @transform_2, window_bounds = array<i64: 1, 256>}, {pipeline_mode = #tpu.pipeline_mode<synchronous>, transform_indices = @transform_3, window_bounds = array<i64: 256, 128>}, {pipeline_mode = #tpu.pipeline_mode<synchronous>, transform_indices = @transform_4, window_bounds = array<i64: 1, 128>}, {transform_indices = @transform_5, window_bounds = array<i64: 32, 1>}, {transform_indices = @transform_6, window_bounds = array<i64: 32, 128>}]} {
    %c0 = arith.constant 0 : index
    %c0_0 = arith.constant 0 : index
    %0 = vector.load %arg1[%c0, %c0_0] : memref<32x128xf32, #tpu.memory_space<vmem>>, vector<32x128xf32>
    %1 = arith.truncf %0 : vector<32x128xf32> to vector<32x128xbf16>
    %c0_1 = arith.constant 0 : index
    %c0_2 = arith.constant 0 : index
    %2 = vector.load %arg2[%c0_1, %c0_2] : memref<128x256xbf16, #tpu.memory_space<vmem>>, vector<128x256xbf16>
    %cst = arith.constant dense<0.000000e+00> : vector<32x256xf32>
    %3 = tpu.matmul %1, %2, %cst {dimension_numbers = #tpu.dot_dimension_numbers<[1], [0], [0], [1], [0, 0, 1, 1], [], []>} : vector<32x128xbf16>, vector<128x256xbf16>, vector<32x256xf32> -> vector<32x256xf32>
    %c0_3 = arith.constant 0 : index
    %c0_4 = arith.constant 0 : index
    %4 = vector.load %arg3[%c0_3, %c0_4] : memref<1x256xf32, #tpu.memory_space<vmem>>, vector<1x256xf32>
    %5 = vector.broadcast %4 : vector<1x256xf32> to vector<32x256xf32>
    %6 = arith.addf %3, %5 : vector<32x256xf32>
    %cst_5 = arith.constant 3.000000e+00 : f32
    %7 = vector.broadcast %cst_5 : f32 to vector<32x256xf32>
    %8 = arith.addf %6, %7 : vector<32x256xf32>
    %cst_6 = arith.constant 0.000000e+00 : f32
    %cst_7 = arith.constant 6.000000e+00 : f32
    %9 = vector.broadcast %cst_6 : f32 to vector<32x256xf32>
    %10 = arith.maximumf %9, %8 : vector<32x256xf32>
    %11 = vector.broadcast %cst_7 : f32 to vector<32x256xf32>
    %12 = arith.minimumf %11, %10 : vector<32x256xf32>
    %13 = arith.mulf %6, %12 : vector<32x256xf32>
    %cst_8 = arith.constant 0.166666672 : f32
    %14 = vector.broadcast %cst_8 : f32 to vector<32x256xf32>
    %15 = arith.mulf %13, %14 : vector<32x256xf32>
    %16 = arith.truncf %15 : vector<32x256xf32> to vector<32x256xbf16>
    %c0_9 = arith.constant 0 : index
    %c0_10 = arith.constant 0 : index
    %17 = vector.load %arg4[%c0_9, %c0_10] : memref<256x128xbf16, #tpu.memory_space<vmem>>, vector<256x128xbf16>
    %cst_11 = arith.constant dense<0.000000e+00> : vector<32x128xf32>
    %18 = tpu.matmul %16, %17, %cst_11 {dimension_numbers = #tpu.dot_dimension_numbers<[1], [0], [0], [1], [0, 0, 1, 1], [], []>} : vector<32x256xbf16>, vector<256x128xbf16>, vector<32x128xf32> -> vector<32x128xf32>
    %c0_12 = arith.constant 0 : index
    %c0_13 = arith.constant 0 : index
    %19 = vector.load %arg5[%c0_12, %c0_13] : memref<1x128xf32, #tpu.memory_space<vmem>>, vector<1x128xf32>
    %20 = vector.broadcast %19 : vector<1x128xf32> to vector<32x128xf32>
    %21 = arith.addf %18, %20 : vector<32x128xf32>
    %c0_14 = arith.constant 0 : index
    %c0_15 = arith.constant 0 : index
    %22 = vector.load %arg6[%c0_14, %c0_15] : memref<32x1xf32, #tpu.memory_space<vmem>>, vector<32x1xf32>
    %23 = vector.broadcast %22 : vector<32x1xf32> to vector<32x128xf32>
    %24 = arith.mulf %21, %23 : vector<32x128xf32>
    %25 = arith.addf %0, %24 : vector<32x128xf32>
    %c0_16 = arith.constant 0 : index
    %c0_17 = arith.constant 0 : index
    %26 = vector.load %arg7[%c0_16, %c0_17] : memref<32x128xf32, #tpu.memory_space<vmem>>, vector<32x128xf32>
    tpu.vector_store %arg7[%c0_16, %c0_17], %25 {strides = array<i32>} : memref<32x128xf32, #tpu.memory_space<vmem>>, vector<32x128xf32>,
    return
  }
  func.func @transform_0(%arg0: i32) -> (i32, i32) {
    %c0_i32 = arith.constant 0 : i32
    %c0_i32_0 = arith.constant 0 : i32
    return %arg0, %c0_i32 : i32, i32
  }
  func.func @transform_1(%arg0: i32) -> (i32, i32) {
    %c0_i32 = arith.constant 0 : i32
    %c0_i32_0 = arith.constant 0 : i32
    %c0_i32_1 = arith.constant 0 : i32
    return %c0_i32, %c0_i32_0 : i32, i32
  }
  func.func @transform_2(%arg0: i32) -> (i32, i32) {
    %c0_i32 = arith.constant 0 : i32
    %c0_i32_0 = arith.constant 0 : i32
    %c0_i32_1 = arith.constant 0 : i32
    return %c0_i32, %c0_i32_0 : i32, i32
  }
  func.func @transform_3(%arg0: i32) -> (i32, i32) {
    %c0_i32 = arith.constant 0 : i32
    %c0_i32_0 = arith.constant 0 : i32
    %c0_i32_1 = arith.constant 0 : i32
    return %c0_i32, %c0_i32_0 : i32, i32
  }
  func.func @transform_4(%arg0: i32) -> (i32, i32) {
    %c0_i32 = arith.constant 0 : i32
    %c0_i32_0 = arith.constant 0 : i32
    %c0_i32_1 = arith.constant 0 : i32
    return %c0_i32, %c0_i32_0 : i32, i32
  }
  func.func @transform_5(%arg0: i32) -> (i32, i32) {
    %c0_i32 = arith.constant 0 : i32
    %c0_i32_0 = arith.constant 0 : i32
    return %arg0, %c0_i32 : i32, i32
  }
  func.func @transform_6(%arg0: i32) -> (i32, i32) {
    %c0_i32 = arith.constant 0 : i32
    %c0_i32_0 = arith.constant 0 : i32
    return %arg0, %c0_i32 : i32, i32
  }
}

</mosaic_0001>

<llo_original>
// kernel: tpu_custom_call.1
$region0: #{tpu_custom_call.1}
  #allocation0 [shape = 'u32[]', space=smem, size = 0x4, offset = 0x4, fixed_abs, tag = 'smem constant byte address 0x4 - core index']
  #allocation1 [shape = 'u32[144,128]{1,0:T(1,128)}', space=vmem, size = 0x12000, scoped, tag = 'internal scratch']
  %s0 = inlined_call_operand.hbm [shape: f32[32,128], index: 0, kind: input, shape index: {}]
  %s1 = inlined_call_operand.hbm [shape: bf16[128,256], index: 1, kind: input, shape index: {}]
  %s2 = inlined_call_operand.hbm [shape: f32[1,256], index: 2, kind: input, shape index: {}]
  %s3 = inlined_call_operand.hbm [shape: bf16[256,128], index: 3, kind: input, shape index: {}]
  %s4 = inlined_call_operand.hbm [shape: f32[1,128], index: 4, kind: input, shape index: {}]
  %s5 = inlined_call_operand.hbm [shape: f32[32,1], index: 5, kind: input, shape index: {}]
  %s6 = inlined_call_operand.hbm [shape: f32[32,128], index: 6, kind: output, shape index: {}]
  %s7 = sld [smem:[#allocation0]]
  $region58: #{tpu_custom_call.1} parent=0
    _
  %s9 = ssub.s32 1, %s7
  %s10 = scalar_select 0, %s9, %s7
  $region1: #{tpu_custom_call.1} parent=0
    #allocation2 [shape = 'u8[16384]{0}', space=vmem, size = 0x4000, scoped, tag = 'input window, operand 0, single buffered']
    #allocation3 [shape = 's32[1]{0}', space=sflag, size = 0x4, scoped, tag = 'scoped memory for tpu_custom_call.1']
    #allocation4 [shape = 's32[1]{0}', space=sflag, size = 0x4, scoped, tag = 'scoped memory for tpu_custom_call.1']
    #allocation5 [shape = 'u8[65536]{0}', space=vmem, size = 0x10000, scoped, tag = 'input window, operand 1, single buffered']
    #allocation6 [shape = 's32[1]{0}', space=sflag, size = 0x4, scoped, tag = 'scoped memory for tpu_custom_call.1']
    #allocation7 [shape = 'u8[1024]{0}', space=vmem, size = 0x400, scoped, tag = 'input window, operand 2, single buffered']
    #allocation8 [shape = 'u8[65536]{0}', space=vmem, size = 0x10000, scoped, tag = 'input window, operand 3, single buffered']
    #allocation9 [shape = 's32[1]{0}', space=sflag, size = 0x4, scoped, tag = 'scoped memory for tpu_custom_call.1']
    #allocation10 [shape = 'u8[512]{0}', space=vmem, size = 0x400, scoped, tag = 'input window, operand 4, single buffered']
    #allocation11 [shape = 'u8[16384]{0}', space=vmem, size = 0x4000, scoped, tag = 'input window, operand 5, single buffered']
    #allocation12 [shape = 's32[1]{0}', space=sflag, size = 0x4, scoped, tag = 'scoped memory for tpu_custom_call.1']
    #allocation13 [shape = 'u8[16384]{0}', space=vmem, size = 0x4000, scoped, tag = 'output window, operand 0, single buffered']
    %11 = vsyncpa [#allocation3], 0
    %12 = vsyncpa [#allocation6], 0
    %13 = vsyncpa [#allocation9], 0
    %14 = vsyncpa [#allocation12], 0
    %15 = vsyncpa [#allocation4], 0
    // Predicated region
    $region2: #{tpu_custom_call.1} parent=1 // pred_check
      _
    $region3: #{tpu_custom_call.1} parent=1 // pred_check_branch
      %17 = sbr.rel (0) target = $region5
    $region4: #{tpu_custom_call.1} parent=1 // pred_region
      %s19 = ssub.s32 512, 512
      %20 = vsyncadd [#allocation3], %s19
      %s21 = sshll.u32 [#allocation2], 4
      %s22 = int_to_ptr.vmem [resolvable:$true] %s21
      %27 = dma.hbm_to_vmem [thread:$0]  %s0, 512, %s22, [#allocation3], 128, 128, 8
    $region5: #{tpu_custom_call.1} parent=1 // pred_fallthru
      _
    // Predicated region
    $region6: #{tpu_custom_call.1} parent=1 // pred_check
      _
    $region7: #{tpu_custom_call.1} parent=1 // pred_check_branch
      %29 = sbr.rel (0) target = $region9
    $region8: #{tpu_custom_call.1} parent=1 // pred_region
      %s31 = ssub.s32 2048, 2048
      %32 = vsyncadd [#allocation6], %s31
      %s33 = sshll.u32 [#allocation5], 4
      %s34 = int_to_ptr.vmem [resolvable:$true] %s33
      %39 = dma.hbm_to_vmem [thread:$0]  %s1, 2048, %s34, [#allocation6], 128, 128, 8
    $region9: #{tpu_custom_call.1} parent=1 // pred_fallthru
      _
    // Predicated region
    $region10: #{tpu_custom_call.1} parent=1 // pred_check
      _
    $region11: #{tpu_custom_call.1} parent=1 // pred_check_branch
      %41 = sbr.rel (0) target = $region13
    $region12: #{tpu_custom_call.1} parent=1 // pred_region
      %s43 = ssub.s32 32, 32
      %44 = vsyncadd [#allocation6], %s43
      %s46 = sshll.u32 [#allocation7], 4
      %s47 = int_to_ptr.vmem [resolvable:$true] %s46
      %49 = dma.hbm_to_vmem [thread:$0]  %s2, 32, %s47, [#allocation6]
    $region13: #{tpu_custom_call.1} parent=1 // pred_fallthru
      _
    // Predicated region
    $region14: #{tpu_custom_call.1} parent=1 // pred_check
      _
    $region15: #{tpu_custom_call.1} parent=1 // pred_check_branch
      %51 = sbr.rel (0) target = $region17
    $region16: #{tpu_custom_call.1} parent=1 // pred_region
      %s53 = ssub.s32 2048, 2048
      %54 = vsyncadd [#allocation9], %s53
      %s55 = sshll.u32 [#allocation8], 4
      %s56 = int_to_ptr.vmem [resolvable:$true] %s55
      %61 = dma.hbm_to_vmem [thread:$0]  %s3, 2048, %s56, [#allocation9], 64, 64, 4
    $region17: #{tpu_custom_call.1} parent=1 // pred_fallthru
      _
    // Predicated region
    $region18: #{tpu_custom_call.1} parent=1 // pred_check
      _
    $region19: #{tpu_custom_call.1} parent=1 // pred_check_branch
      %63 = sbr.rel (0) target = $region21
    $region20: #{tpu_custom_call.1} parent=1 // pred_region
      %s65 = ssub.s32 16, 16
      %66 = vsyncadd [#allocation9], %s65
      %s68 = sshll.u32 [#allocation10], 4
      %s69 = int_to_ptr.vmem [resolvable:$true] %s68
      %71 = dma.hbm_to_vmem [thread:$0]  %s4, 16, %s69, [#allocation9]
    $region21: #{tpu_custom_call.1} parent=1 // pred_fallthru
      _
    // Predicated region
    $region22: #{tpu_custom_call.1} parent=1 // pred_check
      _
    $region23: #{tpu_custom_call.1} parent=1 // pred_check_branch
      %73 = sbr.rel (0) target = $region25
    $region24: #{tpu_custom_call.1} parent=1 // pred_region
      %s75 = ssub.s32 512, 512
      %76 = vsyncadd [#allocation12], %s75
      %s77 = sshll.u32 [#allocation11], 4
      %s78 = int_to_ptr.vmem [resolvable:$true] %s77
      %83 = dma.hbm_to_vmem [thread:$0]  %s5, 512, %s78, [#allocation12], 128, 128, 8
    $region25: #{tpu_custom_call.1} parent=1 // pred_fallthru
      _
    // Predicated region
    $region26: #{tpu_custom_call.1} parent=1 // pred_check
      _
    $region27: #{tpu_custom_call.1} parent=1 // pred_check_branch
      %85 = sbr.rel (0) target = $region29
    $region28: #{tpu_custom_call.1} parent=1 // pred_region
      %86 = dma.done [#allocation3], 512
    $region29: #{tpu_custom_call.1} parent=1 // pred_fallthru
      _
    // Predicated region
    $region30: #{tpu_custom_call.1} parent=1 // pred_check
      _
    $region31: #{tpu_custom_call.1} parent=1 // pred_check_branch
      %88 = sbr.rel (0) target = $region33
    $region32: #{tpu_custom_call.1} parent=1 // pred_region
      %89 = dma.done [#allocation6], 2048
    $region33: #{tpu_custom_call.1} parent=1 // pred_fallthru
      _
    // Predicated region
    $region34: #{tpu_custom_call.1} parent=1 // pred_check
      _
    $region35: #{tpu_custom_call.1} parent=1 // pred_check_branch
      %91 = sbr.rel (0) target = $region37
    $region36: #{tpu_custom_call.1} parent=1 // pred_region
      %92 = dma.done [#allocation6], 32
    $region37: #{tpu_custom_call.1} parent=1 // pred_fallthru
      _
    // Predicated region
    $region38: #{tpu_custom_call.1} parent=1 // pred_check
      _
    $region39: #{tpu_custom_call.1} parent=1 // pred_check_branch
      %94 = sbr.rel (0) target = $region41
    $region40: #{tpu_custom_call.1} parent=1 // pred_region
      %95 = dma.done [#allocation9], 2048
    $region41: #{tpu_custom_call.1} parent=1 // pred_fallthru
      _
    // Predicated region
    $region42: #{tpu_custom_call.1} parent=1 // pred_check
      _
    $region43: #{tpu_custom_call.1} parent=1 // pred_check_branch
      %97 = sbr.rel (0) target = $region45
    $region44: #{tpu_custom_call.1} parent=1 // pred_region
      %98 = dma.done [#allocation9], 16
    $region45: #{tpu_custom_call.1} parent=1 // pred_fallthru
      _
    // Predicated region
    $region46: #{tpu_custom_call.1} parent=1 // pred_check
      _
    $region47: #{tpu_custom_call.1} parent=1 // pred_check_branch
      %100 = sbr.rel (0) target = $region49
    $region48: #{tpu_custom_call.1} parent=1 // pred_region
      %101 = dma.done [#allocation12], 512
    $region49: #{tpu_custom_call.1} parent=1 // pred_fallthru
      _
    %v103 = vld [vmem:[#allocation2] sm:$0xff]
    %v104 = vld [vmem:[#allocation2 + $0x8] sm:$0xff]
    %v105 = vld [vmem:[#allocation2 + $0x10] sm:$0xff]
    %v106 = vld [vmem:[#allocation2 + $0x18] sm:$0xff]
    %v107 = vpack.c.bf16 %v104, %v103
    %v108 = vpack.c.bf16 %v106, %v105
    %v109 = vld [vmem:[#allocation5] sm:$0xff]
    %v110 = vld [vmem:[#allocation5 + $0x8] sm:$0xff]
    %v111 = vld [vmem:[#allocation5 + $0x10] sm:$0xff]
    %v112 = vld [vmem:[#allocation5 + $0x18] sm:$0xff]
    %v113 = vld [vmem:[#allocation5 + $0x20] sm:$0xff]
    %v114 = vld [vmem:[#allocation5 + $0x28] sm:$0xff]
    %v115 = vld [vmem:[#allocation5 + $0x30] sm:$0xff]
    %v116 = vld [vmem:[#allocation5 + $0x38] sm:$0xff]
    %v117 = vld [vmem:[#allocation5 + $0x40] sm:$0xff]
    %v118 = vld [vmem:[#allocation5 + $0x48] sm:$0xff]
    %v119 = vld [vmem:[#allocation5 + $0x50] sm:$0xff]
    %v120 = vld [vmem:[#allocation5 + $0x58] sm:$0xff]
    %v121 = vld [vmem:[#allocation5 + $0x60] sm:$0xff]
    %v122 = vld [vmem:[#allocation5 + $0x68] sm:$0xff]
    %v123 = vld [vmem:[#allocation5 + $0x70] sm:$0xff]
    %v124 = vld [vmem:[#allocation5 + $0x78] sm:$0xff]
    %v125 = vld [vmem:[#allocation7] sm:$0x3]
    %v127 = vlaneseq
    %v128 = vshrl.u32 %v127, 7
    %v129 = vsub.s32 0, %v128
    %v130 = vrot.slane %v125, %v129
    %v131 = vlaneseq
    %v132 = vshrl.u32 %v131, 7
    %v133 = vsub.s32 1, %v132
    %v134 = vrot.slane %v125, %v133
    %v153 = vunpack.c.l.b16 %v109
    %v154 = vunpack.c.h.b16 %v109
    %v155 = vunpack.c.l.b16 %v110
    %v156 = vunpack.c.h.b16 %v110
    %v157 = vunpack.c.l.b16 %v111
    %v158 = vunpack.c.h.b16 %v111
    %v159 = vunpack.c.l.b16 %v112
    %v160 = vunpack.c.h.b16 %v112
    %v161 = vunpack.c.l.b16 %v113
    %v162 = vunpack.c.h.b16 %v113
    %v163 = vunpack.c.l.b16 %v114
    %v164 = vunpack.c.h.b16 %v114
    %v165 = vunpack.c.l.b16 %v115
    %v166 = vunpack.c.h.b16 %v115
    %v167 = vunpack.c.l.b16 %v116
    %v168 = vunpack.c.h.b16 %v116
    %v169 = vunpack.c.l.b16 %v117
    %v170 = vunpack.c.h.b16 %v117
    %v171 = vunpack.c.l.b16 %v118
    %v172 = vunpack.c.h.b16 %v118
    %v173 = vunpack.c.l.b16 %v119
    %v174 = vunpack.c.h.b16 %v119
    %v175 = vunpack.c.l.b16 %v120
    %v176 = vunpack.c.h.b16 %v120
    %v177 = vunpack.c.l.b16 %v121
    %v178 = vunpack.c.h.b16 %v121
    %v179 = vunpack.c.l.b16 %v122
    %v180 = vunpack.c.h.b16 %v122
    %v181 = vunpack.c.l.b16 %v123
    %v182 = vunpack.c.h.b16 %v123
    %v183 = vunpack.c.l.b16 %v124
    %v184 = vunpack.c.h.b16 %v124
    %v185 = vpack.c.b16 %v155, %v153
    %v186 = vpack.c.b16 %v156, %v154
    %v187 = vpack.c.b16 %v159, %v157
    %v188 = vpack.c.b16 %v160, %v158
    %v189 = vpack.c.b16 %v163, %v161
    %v190 = vpack.c.b16 %v164, %v162
    %v191 = vpack.c.b16 %v167, %v165
    %v192 = vpack.c.b16 %v168, %v166
    %v193 = vpack.c.b16 %v171, %v169
    %v194 = vpack.c.b16 %v172, %v170
    %v195 = vpack.c.b16 %v175, %v173
    %v196 = vpack.c.b16 %v176, %v174
    %v197 = vpack.c.b16 %v179, %v177
    %v198 = vpack.c.b16 %v180, %v178
    %v199 = vpack.c.b16 %v183, %v181
    %v200 = vpack.c.b16 %v184, %v182
    %217 = vmatprep.subr.bf16.mxu0 %v186
    %218 = vmatpush1.bf16.msra.mxu0 %v185
    %219 = vmatprep.subr.bf16.mxu0 %v188
    %220 = vmatpush1.bf16.msra.mxu0 %v187
    %221 = vmatprep.subr.bf16.mxu0 %v190
    %222 = vmatpush1.bf16.msra.mxu0 %v189
    %223 = vmatprep.subr.bf16.mxu0 %v192
    %224 = vmatpush1.bf16.msra.mxu0 %v191
    %225 = vmatprep.subr.bf16.mxu0 %v194
    %226 = vmatpush1.bf16.msra.mxu0 %v193
    %227 = vmatprep.subr.bf16.mxu0 %v196
    %228 = vmatpush1.bf16.msra.mxu0 %v195
    %229 = vmatprep.subr.bf16.mxu0 %v198
    %230 = vmatpush1.bf16.msra.mxu0 %v197
    %231 = vmatprep.subr.bf16.mxu0 %v200
    %232 = vmatpush1.bf16.msra.mxu0 %v199
    %233 = vmatprep.subr.bf16.mxu0 0
    %234 = vmatpush1.bf16.msra.mxu0 0
    %235 = vmatprep.subr.bf16.mxu0 0
    %236 = vmatpush1.bf16.msra.mxu0 0
    %237 = vmatprep.subr.bf16.mxu0 0
    %238 = vmatpush1.bf16.msra.mxu0 0
    %239 = vmatprep.subr.bf16.mxu0 0
    %240 = vmatpush1.bf16.msra.mxu0 0
    %241 = vmatprep.subr.bf16.mxu0 0
    %242 = vmatpush1.bf16.msra.mxu0 0
    %243 = vmatprep.subr.bf16.mxu0 0
    %244 = vmatpush1.bf16.msra.mxu0 0
    %245 = vmatprep.subr.bf16.mxu0 0
    %246 = vmatpush1.bf16.msra.mxu0 0
    %247 = vmatprep.subr.bf16.mxu0 0
    %248 = vmatpush1.bf16.msra.mxu0 0
    %249 = vmatprep.mubr.bf16.mxu0 0
    %250 = vmatmul.mubr.bf16.gmra.mrb[0].mxu0 %v107
    %v251 = vpop.f32.mrb[0].mxu0
    %v252 = vadd.f32 %v130, %v251
    %v253 = vpop.f32.mrb[0].mxu0
    %v254 = vadd.f32 %v134, %v253
    %v255 = vpop.f32.mrb[0].mxu0
    %v256 = vadd.f32 %v130, %v255
    %v257 = vpop.f32.mrb[0].mxu0
    %v258 = vadd.f32 %v134, %v257
    %259 = vmatprep.mubr.bf16.mxu0 0
    %260 = vmatmul.mubr.bf16.gmra.mrb[0].mxu0 %v108
    %v261 = vpop.f32.mrb[0].mxu0
    %v262 = vadd.f32 %v130, %v261
    %v263 = vpop.f32.mrb[0].mxu0
    %v264 = vadd.f32 %v134, %v263
    %v265 = vpop.f32.mrb[0].mxu0
    %v266 = vadd.f32 %v130, %v265
    %v267 = vpop.f32.mrb[0].mxu0
    %v268 = vadd.f32 %v134, %v267
    %269 = vdwg.mxu0
    %v270 = vadd.f32 %v252, 3.0
    %v271 = vadd.f32 %v254, 3.0
    %v272 = vadd.f32 %v256, 3.0
    %v273 = vadd.f32 %v258, 3.0
    %v274 = vadd.f32 %v262, 3.0
    %v275 = vadd.f32 %v264, 3.0
    %v276 = vadd.f32 %v266, 3.0
    %v277 = vadd.f32 %v268, 3.0
    %v278 = vmax.f32 %v270, 0.0
    %v279 = vmax.f32 %v271, 0.0
    %v280 = vmax.f32 %v272, 0.0
    %v281 = vmax.f32 %v273, 0.0
    %v282 = vmax.f32 %v274, 0.0
    %v283 = vmax.f32 %v275, 0.0
    %v284 = vmax.f32 %v276, 0.0
    %v285 = vmax.f32 %v277, 0.0
    %v286 = vmin.f32 %v278, 6.0
    %v287 = vmin.f32 %v279, 6.0
    %v288 = vmin.f32 %v280, 6.0
    %v289 = vmin.f32 %v281, 6.0
    %v290 = vmin.f32 %v282, 6.0
    %v291 = vmin.f32 %v283, 6.0
    %v292 = vmin.f32 %v284, 6.0
    %v293 = vmin.f32 %v285, 6.0
    %v294 = vmul.f32 %v252, %v286
    %v295 = vmul.f32 %v254, %v287
    %v296 = vmul.f32 %v256, %v288
    %v297 = vmul.f32 %v258, %v289
    %v298 = vmul.f32 %v262, %v290
    %v299 = vmul.f32 %v264, %v291
    %v300 = vmul.f32 %v266, %v292
    %v301 = vmul.f32 %v268, %v293
    %v302 = vmul.f32 %v294, 0.16666667
    %v303 = vmul.f32 %v295, 0.16666667
    %v304 = vmul.f32 %v296, 0.16666667
    %v305 = vmul.f32 %v297, 0.16666667
    %v306 = vmul.f32 %v298, 0.16666667
    %v307 = vmul.f32 %v299, 0.16666667
    %v308 = vmul.f32 %v300, 0.16666667
    %v309 = vmul.f32 %v301, 0.16666667
    %v310 = vpack.c.bf16 %v304, %v302
    %v311 = vpack.c.bf16 %v305, %v303
    %v312 = vpack.c.bf16 %v308, %v306
    %v313 = vpack.c.bf16 %v309, %v307
    %v314 = vld [vmem:[#allocation8] sm:$0xf]
    %v315 = vld [vmem:[#allocation8 + $0x4] sm:$0xf]
    %v316 = vld [vmem:[#allocation8 + $0x8] sm:$0xf]
    %v317 = vld [vmem:[#allocation8 + $0xc] sm:$0xf]
    %v318 = vld [vmem:[#allocation8 + $0x10] sm:$0xf]
    %v319 = vld [vmem:[#allocation8 + $0x14] sm:$0xf]
    %v320 = vld [vmem:[#allocation8 + $0x18] sm:$0xf]
    %v321 = vld [vmem:[#allocation8 + $0x1c] sm:$0xf]
    %v322 = vld [vmem:[#allocation8 + $0x20] sm:$0xf]
    %v323 = vld [vmem:[#allocation8 + $0x24] sm:$0xf]
    %v324 = vld [vmem:[#allocation8 + $0x28] sm:$0xf]
    %v325 = vld [vmem:[#allocation8 + $0x2c] sm:$0xf]
    %v326 = vld [vmem:[#allocation8 + $0x30] sm:$0xf]
    %v327 = vld [vmem:[#allocation8 + $0x34] sm:$0xf]
    %v328 = vld [vmem:[#allocation8 + $0x38] sm:$0xf]
    %v329 = vld [vmem:[#allocation8 + $0x3c] sm:$0xf]
    %v330 = vld [vmem:[#allocation8 + $0x40] sm:$0xf]
    %v331 = vld [vmem:[#allocation8 + $0x44] sm:$0xf]
    %v332 = vld [vmem:[#allocation8 + $0x48] sm:$0xf]
    %v333 = vld [vmem:[#allocation8 + $0x4c] sm:$0xf]
    %v334 = vld [vmem:[#allocation8 + $0x50] sm:$0xf]
    %v335 = vld [vmem:[#allocation8 + $0x54] sm:$0xf]
    %v336 = vld [vmem:[#allocation8 + $0x58] sm:$0xf]
    %v337 = vld [vmem:[#allocation8 + $0x5c] sm:$0xf]
    %v338 = vld [vmem:[#allocation8 + $0x60] sm:$0xf]
    %v339 = vld [vmem:[#allocation8 + $0x64] sm:$0xf]
    %v340 = vld [vmem:[#allocation8 + $0x68] sm:$0xf]
    %v341 = vld [vmem:[#allocation8 + $0x6c] sm:$0xf]
    %v342 = vld [vmem:[#allocation8 + $0x70] sm:$0xf]
    %v343 = vld [vmem:[#allocation8 + $0x74] sm:$0xf]
    %v344 = vld [vmem:[#allocation8 + $0x78] sm:$0xf]
    %v345 = vld [vmem:[#allocation8 + $0x7c] sm:$0xf]
    %v346 = vld [vmem:[#allocation10] sm:$0x1]
    %v348 = vlaneseq
    %v349 = vshrl.u32 %v348, 7
    %v350 = vsub.s32 0, %v349
    %v351 = vrot.slane %v346, %v350
    %v385 = vunpack.c.l.b16 %v314
    %v386 = vunpack.c.l.b16 %v315
    %v387 = vunpack.c.l.b16 %v316
    %v388 = vunpack.c.l.b16 %v317
    %v389 = vunpack.c.l.b16 %v318
    %v390 = vunpack.c.l.b16 %v319
    %v391 = vunpack.c.l.b16 %v320
    %v392 = vunpack.c.l.b16 %v321
    %v393 = vunpack.c.l.b16 %v322
    %v394 = vunpack.c.l.b16 %v323
    %v395 = vunpack.c.l.b16 %v324
    %v396 = vunpack.c.l.b16 %v325
    %v397 = vunpack.c.l.b16 %v326
    %v398 = vunpack.c.l.b16 %v327
    %v399 = vunpack.c.l.b16 %v328
    %v400 = vunpack.c.l.b16 %v329
    %v401 = vunpack.c.l.b16 %v330
    %v402 = vunpack.c.l.b16 %v331
    %v403 = vunpack.c.l.b16 %v332
    %v404 = vunpack.c.l.b16 %v333
    %v405 = vunpack.c.l.b16 %v334
    %v406 = vunpack.c.l.b16 %v335
    %v407 = vunpack.c.l.b16 %v336
    %v408 = vunpack.c.l.b16 %v337
    %v409 = vunpack.c.l.b16 %v338
    %v410 = vunpack.c.l.b16 %v339
    %v411 = vunpack.c.l.b16 %v340
    %v412 = vunpack.c.l.b16 %v341
    %v413 = vunpack.c.l.b16 %v342
    %v414 = vunpack.c.l.b16 %v343
    %v415 = vunpack.c.l.b16 %v344
    %v416 = vunpack.c.l.b16 %v345
    %v417 = vpack.c.b16 %v386, %v385
    %v418 = vpack.c.b16 %v388, %v387
    %v419 = vpack.c.b16 %v390, %v389
    %v420 = vpack.c.b16 %v392, %v391
    %v421 = vpack.c.b16 %v394, %v393
    %v422 = vpack.c.b16 %v396, %v395
    %v423 = vpack.c.b16 %v398, %v397
    %v424 = vpack.c.b16 %v400, %v399
    %v425 = vpack.c.b16 %v402, %v401
    %v426 = vpack.c.b16 %v404, %v403
    %v427 = vpack.c.b16 %v406, %v405
    %v428 = vpack.c.b16 %v408, %v407
    %v429 = vpack.c.b16 %v410, %v409
    %v430 = vpack.c.b16 %v412, %v411
    %v431 = vpack.c.b16 %v414, %v413
    %v432 = vpack.c.b16 %v416, %v415
    %449 = vmatprep.subr.bf16.mxu0 0
    %450 = vmatpush1.bf16.msra.mxu0 %v417
    %451 = vmatprep.subr.bf16.mxu0 0
    %452 = vmatpush1.bf16.msra.mxu0 %v418
    %453 = vmatprep.subr.bf16.mxu0 0
    %454 = vmatpush1.bf16.msra.mxu0 %v419
    %455 = vmatprep.subr.bf16.mxu0 0
    %456 = vmatpush1.bf16.msra.mxu0 %v420
    %457 = vmatprep.subr.bf16.mxu0 0
    %458 = vmatpush1.bf16.msra.mxu0 %v421
    %459 = vmatprep.subr.bf16.mxu0 0
    %460 = vmatpush1.bf16.msra.mxu0 %v422
    %461 = vmatprep.subr.bf16.mxu0 0
    %462 = vmatpush1.bf16.msra.mxu0 %v423
    %463 = vmatprep.subr.bf16.mxu0 0
    %464 = vmatpush1.bf16.msra.mxu0 %v424
    %465 = vmatprep.subr.bf16.mxu0 0
    %466 = vmatpush1.bf16.msra.mxu0 %v425
    %467 = vmatprep.subr.bf16.mxu0 0
    %468 = vmatpush1.bf16.msra.mxu0 %v426
    %469 = vmatprep.subr.bf16.mxu0 0
    %470 = vmatpush1.bf16.msra.mxu0 %v427
    %471 = vmatprep.subr.bf16.mxu0 0
    %472 = vmatpush1.bf16.msra.mxu0 %v428
    %473 = vmatprep.subr.bf16.mxu0 0
    %474 = vmatpush1.bf16.msra.mxu0 %v429
    %475 = vmatprep.subr.bf16.mxu0 0
    %476 = vmatpush1.bf16.msra.mxu0 %v430
    %477 = vmatprep.subr.bf16.mxu0 0
    %478 = vmatpush1.bf16.msra.mxu0 %v431
    %479 = vmatprep.subr.bf16.mxu0 0
    %480 = vmatpush1.bf16.msra.mxu0 %v432
    %481 = vmatprep.mubr.bf16.mxu0 %v311
    %482 = vmatmul.mubr.bf16.gmra.mrb[0].mxu0 %v310
    %v483 = vpop.f32.mrb[0].mxu0
    %v484 = vadd.f32 %v351, %v483
    %v485 = vpop.f32.mrb[0].mxu0
    %v486 = vpop.f32.mrb[0].mxu0
    %v487 = vadd.f32 %v351, %v486
    %v488 = vpop.f32.mrb[0].mxu0
    %489 = vmatprep.mubr.bf16.mxu0 %v313
    %490 = vmatmul.mubr.bf16.gmra.mrb[0].mxu0 %v312
    %v491 = vpop.f32.mrb[0].mxu0
    %v492 = vadd.f32 %v351, %v491
    %v493 = vpop.f32.mrb[0].mxu0
    %v494 = vpop.f32.mrb[0].mxu0
    %v495 = vadd.f32 %v351, %v494
    %v496 = vpop.f32.mrb[0].mxu0
    %497 = vdwg.mxu0
    %v498 = vld [vmem:[#allocation11] sm:$0xff]
    %v499 = vld [vmem:[#allocation11 + $0x8] sm:$0xff]
    %v500 = vld [vmem:[#allocation11 + $0x10] sm:$0xff]
    %v501 = vld [vmem:[#allocation11 + $0x18] sm:$0xff]
    %503 = vset.pattern.permute.xlu0 0
    %504 = vperm.xlu0 %503, %v498
    %v505 = vpop.permute.xlu0 %504
    %508 = vset.pattern.permute.xlu0 0
    %509 = vperm.xlu0 %508, %v499
    %v510 = vpop.permute.xlu0 %509
    %513 = vset.pattern.permute.xlu0 0
    %514 = vperm.xlu0 %513, %v500
    %v515 = vpop.permute.xlu0 %514
    %518 = vset.pattern.permute.xlu0 0
    %519 = vperm.xlu0 %518, %v501
    %v520 = vpop.permute.xlu0 %519
    %v522 = vmul.f32 %v484, %v505
    %v523 = vmul.f32 %v487, %v510
    %v524 = vmul.f32 %v492, %v515
    %v525 = vmul.f32 %v495, %v520
    %v526 = vadd.f32 %v103, %v522
    %v527 = vadd.f32 %v104, %v523
    %v528 = vadd.f32 %v105, %v524
    %v529 = vadd.f32 %v106, %v525
    %530 = vst [vmem:[#allocation13] sm:$0xff] %v526
    %531 = vst [vmem:[#allocation13 + $0x8] sm:$0xff] %v527
    %532 = vst [vmem:[#allocation13 + $0x10] sm:$0xff] %v528
    %533 = vst [vmem:[#allocation13 + $0x18] sm:$0xff] %v529
    // Predicated region
    $region50: #{tpu_custom_call.1} parent=1 // pred_check
      _
    $region51: #{tpu_custom_call.1} parent=1 // pred_check_branch
      %535 = sbr.rel (0) target = $region53
    $region52: #{tpu_custom_call.1} parent=1 // pred_region
      %s537 = ssub.s32 512, 512
      %538 = vsyncadd [#allocation4], %s537
      %s539 = sshll.u32 [#allocation13], 4
      %s540 = int_to_ptr.vmem [resolvable:$true] %s539
      %545 = dma.vmem_to_hbm [thread:$0]  %s540, 512, %s6, [#allocation4], 128, 128, 8
    $region53: #{tpu_custom_call.1} parent=1 // pred_fallthru
      _
    // Predicated region
    $region54: #{tpu_custom_call.1} parent=1 // pred_check
      _
    $region55: #{tpu_custom_call.1} parent=1 // pred_check_branch
      %547 = sbr.rel (0) target = $region57
    $region56: #{tpu_custom_call.1} parent=1 // pred_region
      %548 = dma.done [#allocation4], 512
    $region57: #{tpu_custom_call.1} parent=1 // pred_fallthru
      _
    %549 = vsyncpa [#allocation3], 1
    %550 = vsyncpa [#allocation6], 1
    %551 = vsyncpa [#allocation9], 1
    %552 = vsyncpa [#allocation12], 1
    %553 = vsyncpa [#allocation4], 1

</llo_original>
